<compile_context>
chip_gen: v7x
topology: tpu7x:2x2x1
jax: 0.10.0
libtpu: 0.0.40
codegen_flags: <defaults>
</compile_context>

<pallas_src>
import functools

import jax
import jax.numpy as jnp
from jax.experimental import pallas as pl
from jax.experimental.pallas import tpu as pltpu


def _round_up(a: int, b: int) -> int:
    return (a + b - 1) // b * b


def _largest_divisor(n: int, limit: int, mult: int):
    """Largest d with d | n, d % mult == 0 and d <= limit (None if none)."""
    best = None
    for d in range(mult, limit + 1, mult):
        if n % d == 0:
            best = d
    return best


def _dice_sums_kernel(x_ref, t_ref, out_ref, acc_ref, *, softmax):
    """Grid = (outer spatial split, inner spatial tiles).

    x_ref, t_ref : (N, C, tile_s, LANE) VMEM tiles.
    out_ref      : (1, 2*C) SMEM row (resident across the inner axis), holding
                   [intersect_0, denom_0, intersect_1, denom_1, ...].
    acc_ref      : (2, C, ACC_S, LANE) f32 VMEM lane-shaped accumulator.
    """
    i = pl.program_id(1)

    @pl.when(i == 0)
    def _():
        acc_ref[...] = jnp.zeros_like(acc_ref)

    n, c, tile_s, lane = x_ref.shape
    acc_s = acc_ref.shape[2]

    x = x_ref[...].astype(jnp.float32)
    t = t_ref[...].astype(jnp.float32)

    if softmax:
        # Channel softmax fused in-register (exp -> EUP slot, hides under DMA).
        m = jnp.max(x, axis=1, keepdims=True)
        e = jnp.exp(x - m)
        x = e / jnp.sum(e, axis=1, keepdims=True)

    inter = x * t
    den = x * x + t * t

    def fold(v):
        # Reduce (N, C, tile_s, LANE) -> (C, ACC_S, LANE) using only VPU adds
        # (sublane groups folded via a layout-free reshape when possible).
        if acc_s == 1:
            v = jnp.sum(v, axis=2, keepdims=True)      # (N, C, 1, LANE)
            return jnp.sum(v, axis=0)                  # (C, 1, LANE)
        v = v.reshape(n, c, tile_s // acc_s, acc_s, lane)
        return jnp.sum(jnp.sum(v, axis=2), axis=0)     # (C, ACC_S, LANE)

    acc_ref[0] += fold(inter)
    acc_ref[1] += fold(den)

    @pl.when(i == pl.num_programs(1) - 1)
    def _():
        acc = acc_ref[...]
        for cls in range(c):                           # static unroll, C small
            out_ref[0, 2 * cls] = jnp.sum(acc[0, cls])
            out_ref[0, 2 * cls + 1] = jnp.sum(acc[1, cls])


def dice_loss(inputs, target, softmax=False, *, max_tile_bytes=4 << 20):
    """JAX/Pallas equivalent of DiceLoss.forward (returns the summed loss)."""
    assert inputs.shape == target.shape, "predict & target shape do not match"
    N, C = int(inputs.shape[0]), int(inputs.shape[1])
    L = 1
    for d in inputs.shape[2:]:
        L *= int(d)

    # ---- tiling configuration (pure Python / trace-time) -------------------
    lane = next((w for w in (512, 256, 128) if L % w == 0), 128)
    pad_lane = (L % lane) != 0
    l_pad = _round_up(L, lane)
    s_full = l_pad // lane

    isx = jnp.dtype(inputs.dtype).itemsize
    ist = jnp.dtype(target.dtype).itemsize
    # Sublane packing: 8 rows (32-bit), 16 (bf16), 32 (8-bit).
    row_mult = max(8, 32 // min(isx, ist))

    row_bytes_one = max(isx, ist) * N * C * lane           # 1 input, 1 S-row
    row_bytes_db = 2 * (isx + ist) * N * C * lane          # both, double-buffered
    budget = 40 << 20                                      # safe on v7x (64 MiB VMEM)
    tgt_rows = min(max_tile_bytes // max(row_bytes_one, 1),
                   budget // max(row_bytes_db, 1))
    tgt_rows = max(row_mult, (tgt_rows // row_mult) * row_mult)

    pad_s = False
    if s_full <= tgt_rows:
        tile_s, s_used = s_full, s_full
    else:
        tile_s = _largest_divisor(s_full, tgt_rows, row_mult)
        if tile_s is None:
            # Rare ragged spatial extent: one-time pad along S.
            # TODO(synk): mask the ragged tail in-kernel instead of padding.
            pad_s = True
            s_used = _round_up(s_full, row_mult)
            tile_s = _largest_divisor(s_used, tgt_rows, row_mult)
        else:
            s_used = s_full

    n_spatial = s_used // tile_s
    n_outer = 2 if (n_spatial >= 2 and n_spatial % 2 == 0) else 1
    n_inner = n_spatial // n_outer
    acc_s = 8 if tile_s % 8 == 0 else 1

    # ---- softmax handling ---------------------------------------------------
    fuse_softmax = bool(softmax)
    if fuse_softmax and (pad_lane or pad_s):
        # Padded positions would get softmax() = 1/C and pollute the sums, so
        # fall back to the wrapper softmax for (rare) unaligned shapes.
        # TODO(synk): keep softmax fused by masking padded positions in-kernel.
        inputs = jax.nn.softmax(inputs, axis=1)
        fuse_softmax = False

    # ---- array prep (reshapes are free; pads only on unaligned shapes) -----
    def _prep(a):
        a = a.reshape(N, C, L)
        if pad_lane:
            a = jnp.pad(a, ((0, 0), (0, 0), (0, l_pad - L)))
        a = a.reshape(N, C, s_full, lane)
        if pad_s:
            a = jnp.pad(a, ((0, 0), (0, 0), (0, s_used - s_full), (0, 0)))
        return a

    x = _prep(inputs)
    t = _prep(target)

    # ---- pallas call --------------------------------------------------------
    kernel = functools.partial(_dice_sums_kernel, softmax=fuse_softmax)

    tile_in_bytes = (isx + ist) * N * C * tile_s * lane
    acc_bytes = 2 * C * acc_s * lane * 4
    vmem_limit = int(min(48 << 20,
                         max(24 << 20, 2 * tile_in_bytes + acc_bytes + (2 << 20))))

    total = N * C * s_used * lane
    flops = 8 * total + (6 * total if fuse_softmax else 0)
    transcendentals = total if fuse_softmax else 0
    bytes_accessed = total * (isx + ist) + n_outer * 2 * C * 4

    sums = pl.pallas_call(
        kernel,
        out_shape=jax.ShapeDtypeStruct((n_outer, 2 * C), jnp.float32),
        grid=(n_outer, n_inner),
        in_specs=[
            pl.BlockSpec((N, C, tile_s, lane),
                         lambda o, i: (0, 0, o * n_inner + i, 0)),
            pl.BlockSpec((N, C, tile_s, lane),
                         lambda o, i: (0, 0, o * n_inner + i, 0)),
        ],
        out_specs=pl.BlockSpec((1, 2 * C), lambda o, i: (o, 0),
                               memory_space=pltpu.SMEM),
        scratch_shapes=[pltpu.VMEM((2, C, acc_s, lane), jnp.float32)],
        compiler_params=pltpu.CompilerParams(
            dimension_semantics=("parallel", "arbitrary"),
            vmem_limit_bytes=vmem_limit,
        ),
        cost_estimate=pl.CostEstimate(
            flops=flops,
            transcendentals=transcendentals,
            bytes_accessed=bytes_accessed,
        ),
    )(x, t)

    # Combine the outer-split partial sums and compute dice per class.
    sums = sums.reshape(n_outer, C, 2).sum(axis=0)        # (C, 2)
    intersect = sums[:, 0]
    denom = sums[:, 1]
    smooth = jnp.float32(1e-05)
    dice = 1.0 - (2.0 * intersect + smooth) / (denom + smooth)
    return jnp.sum(dice)


def _dice_loss_ref(inputs, target, softmax=False):
    """Pure-JAX reference mirroring the PyTorch module."""
    if softmax:
        inputs = jax.nn.softmax(inputs, axis=1)
    smooth = 1e-05
    loss = 0.0
    n_classes = inputs.shape[1]
    for i in range(n_classes):
        score = inputs[:, i].astype(jnp.float32)
        tgt = target[:, i].astype(jnp.float32)
        intersect = jnp.sum(score * tgt)
        y_sum = jnp.sum(tgt * tgt)
        z_sum = jnp.sum(score * score)
        dice = 1.0 - (2 * intersect + smooth) / (z_sum + y_sum + smooth)
        loss = loss + dice
    return loss


if __name__ == "__main__":
    key = jax.random.PRNGKey(0)
    k1, k2, k3, k4 = jax.random.split(key, 4)

    # Case 1: small NCHW, probabilities already given (softmax=False).
    N, C, H, W = 2, 4, 16, 16
    logits = jax.random.normal(k1, (N, C, H, W), dtype=jnp.float32)
    probs = jax.nn.softmax(logits, axis=1)
    labels = jax.random.randint(k2, (N, H, W), 0, C)
    target = jax.nn.one_hot(labels, C, axis=1, dtype=jnp.float32)

    out = jax.block_until_ready(dice_loss(probs, target, softmax=False))
    ref = _dice_loss_ref(probs, target, softmax=False)
    assert jnp.allclose(out, ref, rtol=1e-5, atol=1e-5), (out, ref)

    # Case 2: fused in-kernel softmax path.
    out_sm = jax.block_until_ready(dice_loss(logits, target, softmax=True))
    ref_sm = _dice_loss_ref(logits, target, softmax=True)
    assert jnp.allclose(out_sm, ref_sm, rtol=1e-5, atol=1e-5), (out_sm, ref_sm)

    # Case 3: force multi-tile accumulation + 2-way outer (megacore) split.
    N2, C2, H2, W2 = 1, 3, 128, 128
    logits2 = jax.random.normal(k3, (N2, C2, H2, W2), dtype=jnp.float32)
    probs2 = jax.nn.softmax(logits2, axis=1)
    labels2 = jax.random.randint(k4, (N2, H2, W2), 0, C2)
    target2 = jax.nn.one_hot(labels2, C2, axis=1, dtype=jnp.float32)

    out2 = jax.block_until_ready(
        dice_loss(probs2, target2, softmax=False, max_tile_bytes=64 * 1024))
    ref2 = _dice_loss_ref(probs2, target2, softmax=False)
    assert jnp.allclose(out2, ref2, rtol=1e-5, atol=1e-5), (out2, ref2)

    # Case 4: bf16 inputs (16-row sublane packing of the streamed tiles).
    probs_bf = probs2.astype(jnp.bfloat16)
    target_bf = target2.astype(jnp.bfloat16)
    out3 = jax.block_until_ready(
        dice_loss(probs_bf, target_bf, softmax=False, max_tile_bytes=64 * 1024))
    ref3 = _dice_loss_ref(probs_bf, target_bf, softmax=False)
    assert jnp.allclose(out3, ref3, rtol=1e-4, atol=1e-4), (out3, ref3)

    print("KERNEL_OK")
</pallas_src>

<mosaic_0001>
module attributes {stable_mosaic.version = 11 : i64} {
  func.func @_dice_sums_kernel(%arg0: i32, %arg1: i32, %arg2: memref<2x4x1x256xf32, #tpu.memory_space<vmem>>, %arg3: memref<2x4x1x256xf32, #tpu.memory_space<vmem>>, %arg4: memref<1x8xf32, #tpu.memory_space<smem>>, %arg5: memref<2x4x1x256xf32, #tpu.memory_space<vmem>>) attributes {dimension_semantics = [#tpu.dimension_semantics<parallel>, #tpu.dimension_semantics<arbitrary>], iteration_bounds = array<i64: 1, 1>, scalar_prefetch = 0 : i64, scratch_operands = 1 : i64, tpu.core_type = #tpu.core_type<tc>, window_params = [{transform_indices = @transform_0, window_bounds = array<i64: 2, 4, 1, 256>}, {transform_indices = @transform_1, window_bounds = array<i64: 2, 4, 1, 256>}, {transform_indices = @transform_2, window_bounds = array<i64: 1, 8>}]} {
    %c0_i32 = arith.constant 0 : i32
    %0 = arith.cmpi eq, %arg1, %c0_i32 : i32
    %1 = arith.extui %0 : i1 to i32
    %c0_i32_0 = arith.constant 0 : i32
    %2 = arith.cmpi ne, %1, %c0_i32_0 : i32
    scf.if %2 {
      %cst_28 = arith.constant 0.000000e+00 : f32
      %30 = vector.broadcast %cst_28 : f32 to vector<2x4x1x256xf32>
      %c0_29 = arith.constant 0 : index
      %c0_30 = arith.constant 0 : index
      %c0_31 = arith.constant 0 : index
      %c0_32 = arith.constant 0 : index
      %31 = vector.load %arg5[%c0_29, %c0_30, %c0_31, %c0_32] : memref<2x4x1x256xf32, #tpu.memory_space<vmem>>, vector<2x4x1x256xf32>
      tpu.vector_store %arg5[%c0_29, %c0_30, %c0_31, %c0_32], %30 {strides = array<i32>} : memref<2x4x1x256xf32, #tpu.memory_space<vmem>>, vector<2x4x1x256xf32>,
    } else {
    }
    %c0 = arith.constant 0 : index
    %c0_1 = arith.constant 0 : index
    %c0_2 = arith.constant 0 : index
    %c0_3 = arith.constant 0 : index
    %3 = vector.load %arg2[%c0, %c0_1, %c0_2, %c0_3] : memref<2x4x1x256xf32, #tpu.memory_space<vmem>>, vector<2x4x1x256xf32>
    %c0_4 = arith.constant 0 : index
    %c0_5 = arith.constant 0 : index
    %c0_6 = arith.constant 0 : index
    %c0_7 = arith.constant 0 : index
    %4 = vector.load %arg3[%c0_4, %c0_5, %c0_6, %c0_7] : memref<2x4x1x256xf32, #tpu.memory_space<vmem>>, vector<2x4x1x256xf32>
    %5 = arith.mulf %3, %4 : vector<2x4x1x256xf32>
    %6 = arith.mulf %3, %3 : vector<2x4x1x256xf32>
    %7 = arith.mulf %4, %4 : vector<2x4x1x256xf32>
    %8 = arith.addf %6, %7 : vector<2x4x1x256xf32>
    %c0_8 = arith.constant 0 : index
    %c0_9 = arith.constant 0 : index
    %c0_10 = arith.constant 0 : index
    %c0_11 = arith.constant 0 : index
    %9 = vector.load %arg5[%c0_8, %c0_9, %c0_10, %c0_11] : memref<2x4x1x256xf32, #tpu.memory_space<vmem>>, vector<1x4x1x256xf32>
    %10 = vector.shape_cast %9 : vector<1x4x1x256xf32> to vector<4x1x256xf32>
    %cst = arith.constant dense<0.000000e+00> : vector<2x4x256xf32>
    %11 = vector.multi_reduction <add>, %5, %cst [2] : vector<2x4x1x256xf32> to vector<2x4x256xf32>
    %12 = vector.shape_cast %11 : vector<2x4x256xf32> to vector<2x4x1x256xf32>
    %cst_12 = arith.constant dense<0.000000e+00> : vector<4x1x256xf32>
    %13 = vector.multi_reduction <add>, %12, %cst_12 [0] : vector<2x4x1x256xf32> to vector<4x1x256xf32>
    %14 = arith.addf %10, %13 : vector<4x1x256xf32>
    %c0_13 = arith.constant 0 : index
    %c0_14 = arith.constant 0 : index
    %c0_15 = arith.constant 0 : index
    %c0_16 = arith.constant 0 : index
    %15 = vector.load %arg5[%c0_13, %c0_14, %c0_15, %c0_16] : memref<2x4x1x256xf32, #tpu.memory_space<vmem>>, vector<1x4x1x256xf32>
    %16 = vector.shape_cast %15 : vector<1x4x1x256xf32> to vector<4x1x256xf32>
    %17 = vector.shape_cast %14 : vector<4x1x256xf32> to vector<1x4x1x256xf32>
    tpu.vector_store %arg5[%c0_13, %c0_14, %c0_15, %c0_16], %17 {strides = array<i32>} : memref<2x4x1x256xf32, #tpu.memory_space<vmem>>, vector<1x4x1x256xf32>,
    %c1 = arith.constant 1 : index
    %c0_17 = arith.constant 0 : index
    %c0_18 = arith.constant 0 : index
    %c0_19 = arith.constant 0 : index
    %18 = vector.load %arg5[%c1, %c0_17, %c0_18, %c0_19] : memref<2x4x1x256xf32, #tpu.memory_space<vmem>>, vector<1x4x1x256xf32>
    %19 = vector.shape_cast %18 : vector<1x4x1x256xf32> to vector<4x1x256xf32>
    %cst_20 = arith.constant dense<0.000000e+00> : vector<2x4x256xf32>
    %20 = vector.multi_reduction <add>, %8, %cst_20 [2] : vector<2x4x1x256xf32> to vector<2x4x256xf32>
    %21 = vector.shape_cast %20 : vector<2x4x256xf32> to vector<2x4x1x256xf32>
    %cst_21 = arith.constant dense<0.000000e+00> : vector<4x1x256xf32>
    %22 = vector.multi_reduction <add>, %21, %cst_21 [0] : vector<2x4x1x256xf32> to vector<4x1x256xf32>
    %23 = arith.addf %19, %22 : vector<4x1x256xf32>
    %c1_22 = arith.constant 1 : index
    %c0_23 = arith.constant 0 : index
    %c0_24 = arith.constant 0 : index
    %c0_25 = arith.constant 0 : index
    %24 = vector.load %arg5[%c1_22, %c0_23, %c0_24, %c0_25] : memref<2x4x1x256xf32, #tpu.memory_space<vmem>>, vector<1x4x1x256xf32>
    %25 = vector.shape_cast %24 : vector<1x4x1x256xf32> to vector<4x1x256xf32>
    %26 = vector.shape_cast %23 : vector<4x1x256xf32> to vector<1x4x1x256xf32>
    tpu.vector_store %arg5[%c1_22, %c0_23, %c0_24, %c0_25], %26 {strides = array<i32>} : memref<2x4x1x256xf32, #tpu.memory_space<vmem>>, vector<1x4x1x256xf32>,
    %c0_i32_26 = arith.constant 0 : i32
    %27 = arith.cmpi eq, %arg1, %c0_i32_26 : i32
    %28 = arith.extui %27 : i1 to i32
    %c0_i32_27 = arith.constant 0 : i32
    %29 = arith.cmpi ne, %28, %c0_i32_27 : i32
    scf.if %29 {
      %c0_28 = arith.constant 0 : index
      %c0_29 = arith.constant 0 : index
      %c0_30 = arith.constant 0 : index
      %c0_31 = arith.constant 0 : index
      %30 = vector.load %arg5[%c0_28, %c0_29, %c0_30, %c0_31] : memref<2x4x1x256xf32, #tpu.memory_space<vmem>>, vector<2x4x1x256xf32>
      %31 = vector.extract_strided_slice %30 {offsets = [0, 0, 0, 0], sizes = [1, 1, 1, 256], strides = [1, 1, 1, 1]} : vector<2x4x1x256xf32> to vector<1x1x1x256xf32>
      %32 = vector.shape_cast %31 : vector<1x1x1x256xf32> to vector<1x256xf32>
      %33 = vector.shape_cast %32 : vector<1x256xf32> to vector<1x1x256xf32>
      %cst_32 = arith.constant dense<0.000000e+00> : vector<1xf32>
      %34 = vector.multi_reduction <add>, %33, %cst_32 [1, 2] : vector<1x1x256xf32> to vector<1xf32>
      %35 = vector.shape_cast %34 : vector<1xf32> to vector<1x1x1xf32>
      %36 = vector.extract %35[0, 0, 0] : f32 from vector<1x1x1xf32>
      %c0_33 = arith.constant 0 : index
      %c0_34 = arith.constant 0 : index
      %37 = memref.load %arg4[%c0_33, %c0_34] : memref<1x8xf32, #tpu.memory_space<smem>>
      memref.store %36, %arg4[%c0_33, %c0_34] : memref<1x8xf32, #tpu.memory_space<smem>>
      %38 = vector.extract_strided_slice %30 {offsets = [1, 0, 0, 0], sizes = [1, 1, 1, 256], strides = [1, 1, 1, 1]} : vector<2x4x1x256xf32> to vector<1x1x1x256xf32>
      %39 = vector.shape_cast %38 : vector<1x1x1x256xf32> to vector<1x256xf32>
      %40 = vector.shape_cast %39 : vector<1x256xf32> to vector<1x1x256xf32>
      %cst_35 = arith.constant dense<0.000000e+00> : vector<1xf32>
      %41 = vector.multi_reduction <add>, %40, %cst_35 [1, 2] : vector<1x1x256xf32> to vector<1xf32>
      %42 = vector.shape_cast %41 : vector<1xf32> to vector<1x1x1xf32>
      %43 = vector.extract %42[0, 0, 0] : f32 from vector<1x1x1xf32>
      %c0_36 = arith.constant 0 : index
      %c1_37 = arith.constant 1 : index
      %44 = memref.load %arg4[%c0_36, %c1_37] : memref<1x8xf32, #tpu.memory_space<smem>>
      memref.store %43, %arg4[%c0_36, %c1_37] : memref<1x8xf32, #tpu.memory_space<smem>>
      %45 = vector.extract_strided_slice %30 {offsets = [0, 1, 0, 0], sizes = [1, 1, 1, 256], strides = [1, 1, 1, 1]} : vector<2x4x1x256xf32> to vector<1x1x1x256xf32>
      %46 = vector.shape_cast %45 : vector<1x1x1x256xf32> to vector<1x256xf32>
      %47 = vector.shape_cast %46 : vector<1x256xf32> to vector<1x1x256xf32>
      %cst_38 = arith.constant dense<0.000000e+00> : vector<1xf32>
      %48 = vector.multi_reduction <add>, %47, %cst_38 [1, 2] : vector<1x1x256xf32> to vector<1xf32>
      %49 = vector.shape_cast %48 : vector<1xf32> to vector<1x1x1xf32>
      %50 = vector.extract %49[0, 0, 0] : f32 from vector<1x1x1xf32>
      %c0_39 = arith.constant 0 : index
      %c2 = arith.constant 2 : index
      %51 = memref.load %arg4[%c0_39, %c2] : memref<1x8xf32, #tpu.memory_space<smem>>
      memref.store %50, %arg4[%c0_39, %c2] : memref<1x8xf32, #tpu.memory_space<smem>>
      %52 = vector.extract_strided_slice %30 {offsets = [1, 1, 0, 0], sizes = [1, 1, 1, 256], strides = [1, 1, 1, 1]} : vector<2x4x1x256xf32> to vector<1x1x1x256xf32>
      %53 = vector.shape_cast %52 : vector<1x1x1x256xf32> to vector<1x256xf32>
      %54 = vector.shape_cast %53 : vector<1x256xf32> to vector<1x1x256xf32>
      %cst_40 = arith.constant dense<0.000000e+00> : vector<1xf32>
      %55 = vector.multi_reduction <add>, %54, %cst_40 [1, 2] : vector<1x1x256xf32> to vector<1xf32>
      %56 = vector.shape_cast %55 : vector<1xf32> to vector<1x1x1xf32>
      %57 = vector.extract %56[0, 0, 0] : f32 from vector<1x1x1xf32>
      %c0_41 = arith.constant 0 : index
      %c3 = arith.constant 3 : index
      %58 = memref.load %arg4[%c0_41, %c3] : memref<1x8xf32, #tpu.memory_space<smem>>
      memref.store %57, %arg4[%c0_41, %c3] : memref<1x8xf32, #tpu.memory_space<smem>>
      %59 = vector.extract_strided_slice %30 {offsets = [0, 2, 0, 0], sizes = [1, 1, 1, 256], strides = [1, 1, 1, 1]} : vector<2x4x1x256xf32> to vector<1x1x1x256xf32>
      %60 = vector.shape_cast %59 : vector<1x1x1x256xf32> to vector<1x256xf32>
      %61 = vector.shape_cast %60 : vector<1x256xf32> to vector<1x1x256xf32>
      %cst_42 = arith.constant dense<0.000000e+00> : vector<1xf32>
      %62 = vector.multi_reduction <add>, %61, %cst_42 [1, 2] : vector<1x1x256xf32> to vector<1xf32>
      %63 = vector.shape_cast %62 : vector<1xf32> to vector<1x1x1xf32>
      %64 = vector.extract %63[0, 0, 0] : f32 from vector<1x1x1xf32>
      %c0_43 = arith.constant 0 : index
      %c4 = arith.constant 4 : index
      %65 = memref.load %arg4[%c0_43, %c4] : memref<1x8xf32, #tpu.memory_space<smem>>
      memref.store %64, %arg4[%c0_43, %c4] : memref<1x8xf32, #tpu.memory_space<smem>>
      %66 = vector.extract_strided_slice %30 {offsets = [1, 2, 0, 0], sizes = [1, 1, 1, 256], strides = [1, 1, 1, 1]} : vector<2x4x1x256xf32> to vector<1x1x1x256xf32>
      %67 = vector.shape_cast %66 : vector<1x1x1x256xf32> to vector<1x256xf32>
      %68 = vector.shape_cast %67 : vector<1x256xf32> to vector<1x1x256xf32>
      %cst_44 = arith.constant dense<0.000000e+00> : vector<1xf32>
      %69 = vector.multi_reduction <add>, %68, %cst_44 [1, 2] : vector<1x1x256xf32> to vector<1xf32>
      %70 = vector.shape_cast %69 : vector<1xf32> to vector<1x1x1xf32>
      %71 = vector.extract %70[0, 0, 0] : f32 from vector<1x1x1xf32>
      %c0_45 = arith.constant 0 : index
      %c5 = arith.constant 5 : index
      %72 = memref.load %arg4[%c0_45, %c5] : memref<1x8xf32, #tpu.memory_space<smem>>
      memref.store %71, %arg4[%c0_45, %c5] : memref<1x8xf32, #tpu.memory_space<smem>>
      %73 = vector.extract_strided_slice %30 {offsets = [0, 3, 0, 0], sizes = [1, 1, 1, 256], strides = [1, 1, 1, 1]} : vector<2x4x1x256xf32> to vector<1x1x1x256xf32>
      %74 = vector.shape_cast %73 : vector<1x1x1x256xf32> to vector<1x256xf32>
      %75 = vector.shape_cast %74 : vector<1x256xf32> to vector<1x1x256xf32>
      %cst_46 = arith.constant dense<0.000000e+00> : vector<1xf32>
      %76 = vector.multi_reduction <add>, %75, %cst_46 [1, 2] : vector<1x1x256xf32> to vector<1xf32>
      %77 = vector.shape_cast %76 : vector<1xf32> to vector<1x1x1xf32>
      %78 = vector.extract %77[0, 0, 0] : f32 from vector<1x1x1xf32>
      %c0_47 = arith.constant 0 : index
      %c6 = arith.constant 6 : index
      %79 = memref.load %arg4[%c0_47, %c6] : memref<1x8xf32, #tpu.memory_space<smem>>
      memref.store %78, %arg4[%c0_47, %c6] : memref<1x8xf32, #tpu.memory_space<smem>>
      %80 = vector.extract_strided_slice %30 {offsets = [1, 3, 0, 0], sizes = [1, 1, 1, 256], strides = [1, 1, 1, 1]} : vector<2x4x1x256xf32> to vector<1x1x1x256xf32>
      %81 = vector.shape_cast %80 : vector<1x1x1x256xf32> to vector<1x256xf32>
      %82 = vector.shape_cast %81 : vector<1x256xf32> to vector<1x1x256xf32>
      %cst_48 = arith.constant dense<0.000000e+00> : vector<1xf32>
      %83 = vector.multi_reduction <add>, %82, %cst_48 [1, 2] : vector<1x1x256xf32> to vector<1xf32>
      %84 = vector.shape_cast %83 : vector<1xf32> to vector<1x1x1xf32>
      %85 = vector.extract %84[0, 0, 0] : f32 from vector<1x1x1xf32>
      %c0_49 = arith.constant 0 : index
      %c7 = arith.constant 7 : index
      %86 = memref.load %arg4[%c0_49, %c7] : memref<1x8xf32, #tpu.memory_space<smem>>
      memref.store %85, %arg4[%c0_49, %c7] : memref<1x8xf32, #tpu.memory_space<smem>>
    } else {
    }
    return
  }
  func.func @transform_0(%arg0: i32, %arg1: i32) -> (i32, i32, i32, i32) {
    %c1_i32 = arith.constant 1 : i32
    %0 = arith.muli %arg0, %c1_i32 : i32
    %1 = arith.addi %0, %arg1 : i32
    %c0_i32 = arith.constant 0 : i32
    %c0_i32_0 = arith.constant 0 : i32
    %c0_i32_1 = arith.constant 0 : i32
    %c0_i32_2 = arith.constant 0 : i32
    return %c0_i32, %c0_i32_0, %1, %c0_i32_1 : i32, i32, i32, i32
  }
  func.func @transform_1(%arg0: i32, %arg1: i32) -> (i32, i32, i32, i32) {
    %c1_i32 = arith.constant 1 : i32
    %0 = arith.muli %arg0, %c1_i32 : i32
    %1 = arith.addi %0, %arg1 : i32
    %c0_i32 = arith.constant 0 : i32
    %c0_i32_0 = arith.constant 0 : i32
    %c0_i32_1 = arith.constant 0 : i32
    %c0_i32_2 = arith.constant 0 : i32
    return %c0_i32, %c0_i32_0, %1, %c0_i32_1 : i32, i32, i32, i32
  }
  func.func @transform_2(%arg0: i32, %arg1: i32) -> (i32, i32) {
    %c0_i32 = arith.constant 0 : i32
    %c0_i32_0 = arith.constant 0 : i32
    return %arg0, %c0_i32 : i32, i32
  }
}

</mosaic_0001>

<llo_original>
// kernel: tpu_custom_call.1
$region0: #{tpu_custom_call.1}
  #allocation0 [shape = 'u32[]', space=smem, size = 0x4, offset = 0x4, fixed_abs, tag = 'smem constant byte address 0x4 - core index']
  #allocation1 [shape = 'u32[144,128]{1,0:T(1,128)}', space=vmem, size = 0x12000, scoped, tag = 'internal scratch']
  #allocation2 [shape = 'f32[2,4,1,256]{3,2,1,0:T(1,128)}', space=vmem, size = 0x2000, scoped, tag = 'scratch operand']
  %s0 = inlined_call_operand.hbm [shape: f32[2,4,1,256], index: 0, kind: input, shape index: {}]
  %s1 = inlined_call_operand.hbm [shape: f32[2,4,1,256], index: 1, kind: input, shape index: {}]
  %s2 = inlined_call_operand.hbm [shape: f32[1,8], index: 2, kind: output, shape index: {}]
  %s3 = sld [smem:[#allocation0]]
  $region34: #{tpu_custom_call.1} parent=0
    _
  %s5 = ssub.s32 1, %s3
  %s6 = scalar_select 0, %s5, %s3
  $region1: #{tpu_custom_call.1} parent=0
    #allocation3 [shape = 'u8[8192]{0}', space=vmem, size = 0x2000, scoped, tag = 'input window, operand 0, single buffered']
    #allocation4 [shape = 's32[1]{0}', space=sflag, size = 0x4, scoped, tag = 'scoped memory for tpu_custom_call.1']
    #allocation5 [shape = 's32[1]{0}', space=sflag, size = 0x4, scoped, tag = 'scoped memory for tpu_custom_call.1']
    #allocation6 [shape = 'u8[8192]{0}', space=vmem, size = 0x2000, scoped, tag = 'input window, operand 1, single buffered']
    #allocation7 [shape = 's32[1]{0}', space=sflag, size = 0x4, scoped, tag = 'scoped memory for tpu_custom_call.1']
    #allocation8 [shape = 'u8[512]{0}', space=smem, size = 0x200, scoped, tag = 'output window, operand 0, single buffered']
    %7 = vsyncpa [#allocation4], 0
    %8 = vsyncpa [#allocation7], 0
    %9 = vsyncpa [#allocation5], 0
    // Predicated region
    $region2: #{tpu_custom_call.1} parent=1 // pred_check
      _
    $region3: #{tpu_custom_call.1} parent=1 // pred_check_branch
      %11 = sbr.rel (0) target = $region5
    $region4: #{tpu_custom_call.1} parent=1 // pred_region
      %s12 = sadd.s32 0, 0
      %s14 = ssub.s32 256, 256
      %15 = vsyncadd [#allocation4], %s14
      %s16 = smul.addr %s12, 2
      %s17 = smul.addr %s16, 16
      %s18 = scalar_lea.hbm %s0, %s17
      %s19 = sshll.u32 [#allocation3], 4
      %s20 = int_to_ptr.vmem [resolvable:$true] %s19
      %25 = dma.hbm_to_vmem [thread:$0]  %s18, 256, %s20, [#allocation4], 32, 32, 2
    $region5: #{tpu_custom_call.1} parent=1 // pred_fallthru
      _
    // Predicated region
    $region6: #{tpu_custom_call.1} parent=1 // pred_check
      _
    $region7: #{tpu_custom_call.1} parent=1 // pred_check_branch
      %27 = sbr.rel (0) target = $region9
    $region8: #{tpu_custom_call.1} parent=1 // pred_region
      %s28 = sadd.s32 0, 0
      %s30 = ssub.s32 256, 256
      %31 = vsyncadd [#allocation7], %s30
      %s32 = smul.addr %s28, 2
      %s33 = smul.addr %s32, 16
      %s34 = scalar_lea.hbm %s1, %s33
      %s35 = sshll.u32 [#allocation6], 4
      %s36 = int_to_ptr.vmem [resolvable:$true] %s35
      %41 = dma.hbm_to_vmem [thread:$0]  %s34, 256, %s36, [#allocation7], 32, 32, 2
    $region9: #{tpu_custom_call.1} parent=1 // pred_fallthru
      _
    // Predicated region
    $region10: #{tpu_custom_call.1} parent=1 // pred_check
      _
    $region11: #{tpu_custom_call.1} parent=1 // pred_check_branch
      %43 = sbr.rel (0) target = $region13
    $region12: #{tpu_custom_call.1} parent=1 // pred_region
      %44 = dma.done [#allocation4], 256
    $region13: #{tpu_custom_call.1} parent=1 // pred_fallthru
      _
    // Predicated region
    $region14: #{tpu_custom_call.1} parent=1 // pred_check
      _
    $region15: #{tpu_custom_call.1} parent=1 // pred_check_branch
      %46 = sbr.rel (0) target = $region17
    $region16: #{tpu_custom_call.1} parent=1 // pred_region
      %47 = dma.done [#allocation7], 256
    $region17: #{tpu_custom_call.1} parent=1 // pred_fallthru
      _
    %s48 = sadd.s32 0, 0
    %s49 = sadd.s32 0, 0
    %p50 = scmp.eq.s32.totalorder 0, 0
    // Predicated region
    $region18: #{tpu_custom_call.1} parent=1 // pred_check
      %p51 = pneg %p50
    $region19: #{tpu_custom_call.1} parent=1 // pred_check_branch
      %53 = sbr.rel (%p51) target = $region21
    $region20: #{tpu_custom_call.1} parent=1 // pred_region
      %v54 = vlaneseq
      %vm55 = vcmp.ge.s32.totalorder %v54, 0
      %vm56 = vcmp.lt.s32.totalorder %v54, 256
      %vm57 = vmand %vm55, %vm56
      %58 = vst.msk [vmem:[#allocation2] sm:$0x3] %vm57, 0.0
      %59 = vst.msk [vmem:[#allocation2 + $0x2] sm:$0x3] %vm57, 0.0
      %60 = vst.msk [vmem:[#allocation2 + $0x4] sm:$0x3] %vm57, 0.0
      %61 = vst.msk [vmem:[#allocation2 + $0x6] sm:$0x3] %vm57, 0.0
      %62 = vst.msk [vmem:[#allocation2 + $0x8] sm:$0x3] %vm57, 0.0
      %63 = vst.msk [vmem:[#allocation2 + $0xa] sm:$0x3] %vm57, 0.0
      %64 = vst.msk [vmem:[#allocation2 + $0xc] sm:$0x3] %vm57, 0.0
      %65 = vst.msk [vmem:[#allocation2 + $0xe] sm:$0x3] %vm57, 0.0
    $region21: #{tpu_custom_call.1} parent=1 // pred_fallthru
      _
    %v66 = vld [vmem:[#allocation3] sm:$0x3]
    %v67 = vld [vmem:[#allocation3 + $0x2] sm:$0x3]
    %v68 = vld [vmem:[#allocation3 + $0x4] sm:$0x3]
    %v69 = vld [vmem:[#allocation3 + $0x6] sm:$0x3]
    %v70 = vld [vmem:[#allocation3 + $0x8] sm:$0x3]
    %v71 = vld [vmem:[#allocation3 + $0xa] sm:$0x3]
    %v72 = vld [vmem:[#allocation3 + $0xc] sm:$0x3]
    %v73 = vld [vmem:[#allocation3 + $0xe] sm:$0x3]
    %v74 = vld [vmem:[#allocation6] sm:$0x3]
    %v75 = vld [vmem:[#allocation6 + $0x2] sm:$0x3]
    %v76 = vld [vmem:[#allocation6 + $0x4] sm:$0x3]
    %v77 = vld [vmem:[#allocation6 + $0x6] sm:$0x3]
    %v78 = vld [vmem:[#allocation6 + $0x8] sm:$0x3]
    %v79 = vld [vmem:[#allocation6 + $0xa] sm:$0x3]
    %v80 = vld [vmem:[#allocation6 + $0xc] sm:$0x3]
    %v81 = vld [vmem:[#allocation6 + $0xe] sm:$0x3]
    %v82 = vmul.f32 %v66, %v74
    %v83 = vmul.f32 %v67, %v75
    %v84 = vmul.f32 %v68, %v76
    %v85 = vmul.f32 %v69, %v77
    %v86 = vmul.f32 %v70, %v78
    %v87 = vmul.f32 %v71, %v79
    %v88 = vmul.f32 %v72, %v80
    %v89 = vmul.f32 %v73, %v81
    %v90 = vmul.f32 %v66, %v66
    %v91 = vmul.f32 %v67, %v67
    %v92 = vmul.f32 %v68, %v68
    %v93 = vmul.f32 %v69, %v69
    %v94 = vmul.f32 %v70, %v70
    %v95 = vmul.f32 %v71, %v71
    %v96 = vmul.f32 %v72, %v72
    %v97 = vmul.f32 %v73, %v73
    %v98 = vmul.f32 %v74, %v74
    %v99 = vmul.f32 %v75, %v75
    %v100 = vmul.f32 %v76, %v76
    %v101 = vmul.f32 %v77, %v77
    %v102 = vmul.f32 %v78, %v78
    %v103 = vmul.f32 %v79, %v79
    %v104 = vmul.f32 %v80, %v80
    %v105 = vmul.f32 %v81, %v81
    %v106 = vadd.f32 %v90, %v98
    %v107 = vadd.f32 %v91, %v99
    %v108 = vadd.f32 %v92, %v100
    %v109 = vadd.f32 %v93, %v101
    %v110 = vadd.f32 %v94, %v102
    %v111 = vadd.f32 %v95, %v103
    %v112 = vadd.f32 %v96, %v104
    %v113 = vadd.f32 %v97, %v105
    %v114 = vld [vmem:[#allocation2] sm:$0x3]
    %v115 = vld [vmem:[#allocation2 + $0x2] sm:$0x3]
    %v116 = vld [vmem:[#allocation2 + $0x4] sm:$0x3]
    %v117 = vld [vmem:[#allocation2 + $0x6] sm:$0x3]
    %v118 = vadd.f32 %v82, 0.0
    %v119 = vadd.f32 %v83, 0.0
    %v120 = vadd.f32 %v84, 0.0
    %v121 = vadd.f32 %v85, 0.0
    %v122 = vadd.f32 %v86, 0.0
    %v123 = vadd.f32 %v87, 0.0
    %v124 = vadd.f32 %v88, 0.0
    %v125 = vadd.f32 %v89, 0.0
    %v134 = vlaneseq
    %v135 = vshrl.u32 %v134, 7
    %v136 = vsub.s32 0, %v135
    %v137 = vrot.slane %v118, %v136
    %v138 = vlaneseq
    %v139 = vshrl.u32 %v138, 7
    %v140 = vsub.s32 1, %v139
    %v141 = vrot.slane %v118, %v140
    %v142 = vlaneseq
    %v143 = vshrl.u32 %v142, 7
    %v144 = vsub.s32 0, %v143
    %v145 = vrot.slane %v119, %v144
    %v146 = vlaneseq
    %v147 = vshrl.u32 %v146, 7
    %v148 = vsub.s32 1, %v147
    %v149 = vrot.slane %v119, %v148
    %v150 = vlaneseq
    %v151 = vshrl.u32 %v150, 7
    %v152 = vsub.s32 0, %v151
    %v153 = vrot.slane %v120, %v152
    %v154 = vlaneseq
    %v155 = vshrl.u32 %v154, 7
    %v156 = vsub.s32 1, %v155
    %v157 = vrot.slane %v120, %v156
    %v158 = vlaneseq
    %v159 = vshrl.u32 %v158, 7
    %v160 = vsub.s32 0, %v159
    %v161 = vrot.slane %v121, %v160
    %v162 = vlaneseq
    %v163 = vshrl.u32 %v162, 7
    %v164 = vsub.s32 1, %v163
    %v165 = vrot.slane %v121, %v164
    %v166 = vlaneseq
    %v167 = vshrl.u32 %v166, 7
    %v168 = vsub.s32 0, %v167
    %v169 = vrot.slane %v122, %v168
    %v170 = vlaneseq
    %v171 = vshrl.u32 %v170, 7
    %v172 = vsub.s32 1, %v171
    %v173 = vrot.slane %v122, %v172
    %v174 = vlaneseq
    %v175 = vshrl.u32 %v174, 7
    %v176 = vsub.s32 0, %v175
    %v177 = vrot.slane %v123, %v176
    %v178 = vlaneseq
    %v179 = vshrl.u32 %v178, 7
    %v180 = vsub.s32 1, %v179
    %v181 = vrot.slane %v123, %v180
    %v182 = vlaneseq
    %v183 = vshrl.u32 %v182, 7
    %v184 = vsub.s32 0, %v183
    %v185 = vrot.slane %v124, %v184
    %v186 = vlaneseq
    %v187 = vshrl.u32 %v186, 7
    %v188 = vsub.s32 1, %v187
    %v189 = vrot.slane %v124, %v188
    %v190 = vlaneseq
    %v191 = vshrl.u32 %v190, 7
    %v192 = vsub.s32 0, %v191
    %v193 = vrot.slane %v125, %v192
    %v194 = vlaneseq
    %v195 = vshrl.u32 %v194, 7
    %v196 = vsub.s32 1, %v195
    %v197 = vrot.slane %v125, %v196
    %vm214 = vcmask 1040384
    %v215 = vsel %vm214, %v137, 0.0
    %v216 = vsel %vm214, %v169, 0.0
    %v217 = vadd.f32 %v215, %v216
    %v218 = vsel %vm214, %v141, 0.0
    %v219 = vsel %vm214, %v173, 0.0
    %v220 = vadd.f32 %v218, %v219
    %v221 = vsel %vm214, %v145, 0.0
    %v222 = vsel %vm214, %v177, 0.0
    %v223 = vadd.f32 %v221, %v222
    %v224 = vsel %vm214, %v149, 0.0
    %v225 = vsel %vm214, %v181, 0.0
    %v226 = vadd.f32 %v224, %v225
    %v227 = vsel %vm214, %v153, 0.0
    %v228 = vsel %vm214, %v185, 0.0
    %v229 = vadd.f32 %v227, %v228
    %v230 = vsel %vm214, %v157, 0.0
    %v231 = vsel %vm214, %v189, 0.0
    %v232 = vadd.f32 %v230, %v231
    %v233 = vsel %vm214, %v161, 0.0
    %v234 = vsel %vm214, %v193, 0.0
    %v235 = vadd.f32 %v233, %v234
    %v236 = vsel %vm214, %v165, 0.0
    %v237 = vsel %vm214, %v197, 0.0
    %v238 = vadd.f32 %v236, %v237
    %v247 = vcombine.low %v217, %v220
    %v249 = vunpack.c.l.s4 1966171168
    %v250 = vunpack.c.0.s8 %v249
    %v251 = vlaneseq
    %v252 = vshrl.u32 %v251, 7
    %v253 = vsub.s32 %v250, %v252
    %v254 = vrot.slane %v247, %v253
    %v256 = vunpack.c.l.s4 1966171168
    %v257 = vunpack.c.0.s8 %v256
    %v258 = vlaneseq
    %v259 = vshrl.u32 %v258, 7
    %v260 = vsub.s32 %v257, %v259
    %v261 = vrot.slane %v254, %v260
    %v262 = vcombine.low %v223, %v226
    %v264 = vunpack.c.l.s4 1966171168
    %v265 = vunpack.c.0.s8 %v264
    %v266 = vlaneseq
    %v267 = vshrl.u32 %v266, 7
    %v268 = vsub.s32 %v265, %v267
    %v269 = vrot.slane %v262, %v268
    %v271 = vunpack.c.l.s4 1966171168
    %v272 = vunpack.c.0.s8 %v271
    %v273 = vlaneseq
    %v274 = vshrl.u32 %v273, 7
    %v275 = vsub.s32 %v272, %v274
    %v276 = vrot.slane %v269, %v275
    %v277 = vcombine.low %v229, %v232
    %v279 = vunpack.c.l.s4 1966171168
    %v280 = vunpack.c.0.s8 %v279
    %v281 = vlaneseq
    %v282 = vshrl.u32 %v281, 7
    %v283 = vsub.s32 %v280, %v282
    %v284 = vrot.slane %v277, %v283
    %v286 = vunpack.c.l.s4 1966171168
    %v287 = vunpack.c.0.s8 %v286
    %v288 = vlaneseq
    %v289 = vshrl.u32 %v288, 7
    %v290 = vsub.s32 %v287, %v289
    %v291 = vrot.slane %v284, %v290
    %v292 = vcombine.low %v235, %v238
    %v294 = vunpack.c.l.s4 1966171168
    %v295 = vunpack.c.0.s8 %v294
    %v296 = vlaneseq
    %v297 = vshrl.u32 %v296, 7
    %v298 = vsub.s32 %v295, %v297
    %v299 = vrot.slane %v292, %v298
    %v301 = vunpack.c.l.s4 1966171168
    %v302 = vunpack.c.0.s8 %v301
    %v303 = vlaneseq
    %v304 = vshrl.u32 %v303, 7
    %v305 = vsub.s32 %v302, %v304
    %v306 = vrot.slane %v299, %v305
    %v311 = vadd.f32 %v114, %v261
    %v312 = vadd.f32 %v115, %v276
    %v313 = vadd.f32 %v116, %v291
    %v314 = vadd.f32 %v117, %v306
    %v315 = vlaneseq
    %vm316 = vcmp.ge.s32.totalorder %v315, 0
    %vm317 = vcmp.lt.s32.totalorder %v315, 256
    %vm318 = vmand %vm316, %vm317
    %319 = vst.msk [vmem:[#allocation2] sm:$0x3] %vm318, %v311
    %320 = vst.msk [vmem:[#allocation2 + $0x2] sm:$0x3] %vm318, %v312
    %321 = vst.msk [vmem:[#allocation2 + $0x4] sm:$0x3] %vm318, %v313
    %322 = vst.msk [vmem:[#allocation2 + $0x6] sm:$0x3] %vm318, %v314
    %s323 = scalar_lea.vmem [#allocation2], 8
    %v324 = vld [vmem:[%s323] sm:$0x3]
    %v325 = vld [vmem:[%s323 + $0x2] sm:$0x3]
    %v326 = vld [vmem:[%s323 + $0x4] sm:$0x3]
    %v327 = vld [vmem:[%s323 + $0x6] sm:$0x3]
    %v328 = vadd.f32 %v106, 0.0
    %v329 = vadd.f32 %v107, 0.0
    %v330 = vadd.f32 %v108, 0.0
    %v331 = vadd.f32 %v109, 0.0
    %v332 = vadd.f32 %v110, 0.0
    %v333 = vadd.f32 %v111, 0.0
    %v334 = vadd.f32 %v112, 0.0
    %v335 = vadd.f32 %v113, 0.0
    %v344 = vlaneseq
    %v345 = vshrl.u32 %v344, 7
    %v346 = vsub.s32 0, %v345
    %v347 = vrot.slane %v328, %v346
    %v348 = vlaneseq
    %v349 = vshrl.u32 %v348, 7
    %v350 = vsub.s32 1, %v349
    %v351 = vrot.slane %v328, %v350
    %v352 = vlaneseq
    %v353 = vshrl.u32 %v352, 7
    %v354 = vsub.s32 0, %v353
    %v355 = vrot.slane %v329, %v354
    %v356 = vlaneseq
    %v357 = vshrl.u32 %v356, 7
    %v358 = vsub.s32 1, %v357
    %v359 = vrot.slane %v329, %v358
    %v360 = vlaneseq
    %v361 = vshrl.u32 %v360, 7
    %v362 = vsub.s32 0, %v361
    %v363 = vrot.slane %v330, %v362
    %v364 = vlaneseq
    %v365 = vshrl.u32 %v364, 7
    %v366 = vsub.s32 1, %v365
    %v367 = vrot.slane %v330, %v366
    %v368 = vlaneseq
    %v369 = vshrl.u32 %v368, 7
    %v370 = vsub.s32 0, %v369
    %v371 = vrot.slane %v331, %v370
    %v372 = vlaneseq
    %v373 = vshrl.u32 %v372, 7
    %v374 = vsub.s32 1, %v373
    %v375 = vrot.slane %v331, %v374
    %v376 = vlaneseq
    %v377 = vshrl.u32 %v376, 7
    %v378 = vsub.s32 0, %v377
    %v379 = vrot.slane %v332, %v378
    %v380 = vlaneseq
    %v381 = vshrl.u32 %v380, 7
    %v382 = vsub.s32 1, %v381
    %v383 = vrot.slane %v332, %v382
    %v384 = vlaneseq
    %v385 = vshrl.u32 %v384, 7
    %v386 = vsub.s32 0, %v385
    %v387 = vrot.slane %v333, %v386
    %v388 = vlaneseq
    %v389 = vshrl.u32 %v388, 7
    %v390 = vsub.s32 1, %v389
    %v391 = vrot.slane %v333, %v390
    %v392 = vlaneseq
    %v393 = vshrl.u32 %v392, 7
    %v394 = vsub.s32 0, %v393
    %v395 = vrot.slane %v334, %v394
    %v396 = vlaneseq
    %v397 = vshrl.u32 %v396, 7
    %v398 = vsub.s32 1, %v397
    %v399 = vrot.slane %v334, %v398
    %v400 = vlaneseq
    %v401 = vshrl.u32 %v400, 7
    %v402 = vsub.s32 0, %v401
    %v403 = vrot.slane %v335, %v402
    %v404 = vlaneseq
    %v405 = vshrl.u32 %v404, 7
    %v406 = vsub.s32 1, %v405
    %v407 = vrot.slane %v335, %v406
    %v424 = vsel %vm214, %v347, 0.0
    %v425 = vsel %vm214, %v379, 0.0
    %v426 = vadd.f32 %v424, %v425
    %v427 = vsel %vm214, %v351, 0.0
    %v428 = vsel %vm214, %v383, 0.0
    %v429 = vadd.f32 %v427, %v428
    %v430 = vsel %vm214, %v355, 0.0
    %v431 = vsel %vm214, %v387, 0.0
    %v432 = vadd.f32 %v430, %v431
    %v433 = vsel %vm214, %v359, 0.0
    %v434 = vsel %vm214, %v391, 0.0
    %v435 = vadd.f32 %v433, %v434
    %v436 = vsel %vm214, %v363, 0.0
    %v437 = vsel %vm214, %v395, 0.0
    %v438 = vadd.f32 %v436, %v437
    %v439 = vsel %vm214, %v367, 0.0
    %v440 = vsel %vm214, %v399, 0.0
    %v441 = vadd.f32 %v439, %v440
    %v442 = vsel %vm214, %v371, 0.0
    %v443 = vsel %vm214, %v403, 0.0
    %v444 = vadd.f32 %v442, %v443
    %v445 = vsel %vm214, %v375, 0.0
    %v446 = vsel %vm214, %v407, 0.0
    %v447 = vadd.f32 %v445, %v446
    %v456 = vcombine.low %v426, %v429
    %v458 = vunpack.c.l.s4 1966171168
    %v459 = vunpack.c.0.s8 %v458
    %v460 = vlaneseq
    %v461 = vshrl.u32 %v460, 7
    %v462 = vsub.s32 %v459, %v461
    %v463 = vrot.slane %v456, %v462
    %v465 = vunpack.c.l.s4 1966171168
    %v466 = vunpack.c.0.s8 %v465
    %v467 = vlaneseq
    %v468 = vshrl.u32 %v467, 7
    %v469 = vsub.s32 %v466, %v468
    %v470 = vrot.slane %v463, %v469
    %v471 = vcombine.low %v432, %v435
    %v473 = vunpack.c.l.s4 1966171168
    %v474 = vunpack.c.0.s8 %v473
    %v475 = vlaneseq
    %v476 = vshrl.u32 %v475, 7
    %v477 = vsub.s32 %v474, %v476
    %v478 = vrot.slane %v471, %v477
    %v480 = vunpack.c.l.s4 1966171168
    %v481 = vunpack.c.0.s8 %v480
    %v482 = vlaneseq
    %v483 = vshrl.u32 %v482, 7
    %v484 = vsub.s32 %v481, %v483
    %v485 = vrot.slane %v478, %v484
    %v486 = vcombine.low %v438, %v441
    %v488 = vunpack.c.l.s4 1966171168
    %v489 = vunpack.c.0.s8 %v488
    %v490 = vlaneseq
    %v491 = vshrl.u32 %v490, 7
    %v492 = vsub.s32 %v489, %v491
    %v493 = vrot.slane %v486, %v492
    %v495 = vunpack.c.l.s4 1966171168
    %v496 = vunpack.c.0.s8 %v495
    %v497 = vlaneseq
    %v498 = vshrl.u32 %v497, 7
    %v499 = vsub.s32 %v496, %v498
    %v500 = vrot.slane %v493, %v499
    %v501 = vcombine.low %v444, %v447
    %v503 = vunpack.c.l.s4 1966171168
    %v504 = vunpack.c.0.s8 %v503
    %v505 = vlaneseq
    %v506 = vshrl.u32 %v505, 7
    %v507 = vsub.s32 %v504, %v506
    %v508 = vrot.slane %v501, %v507
    %v510 = vunpack.c.l.s4 1966171168
    %v511 = vunpack.c.0.s8 %v510
    %v512 = vlaneseq
    %v513 = vshrl.u32 %v512, 7
    %v514 = vsub.s32 %v511, %v513
    %v515 = vrot.slane %v508, %v514
    %v520 = vadd.f32 %v324, %v470
    %v521 = vadd.f32 %v325, %v485
    %v522 = vadd.f32 %v326, %v500
    %v523 = vadd.f32 %v327, %v515
    %524 = vst.msk [vmem:[%s323] sm:$0x3] %vm318, %v520
    %525 = vst.msk [vmem:[%s323 + $0x2] sm:$0x3] %vm318, %v521
    %526 = vst.msk [vmem:[%s323 + $0x4] sm:$0x3] %vm318, %v522
    %527 = vst.msk [vmem:[%s323 + $0x6] sm:$0x3] %vm318, %v523
    // Predicated region
    $region22: #{tpu_custom_call.1} parent=1 // pred_check
      %p528 = pneg %p50
    $region23: #{tpu_custom_call.1} parent=1 // pred_check_branch
      %530 = sbr.rel (%p528) target = $region25
    $region24: #{tpu_custom_call.1} parent=1 // pred_region
      %v531 = vld [vmem:[#allocation2] sm:$0x3]
      %v532 = vld [vmem:[#allocation2 + $0x2] sm:$0x3]
      %v533 = vld [vmem:[#allocation2 + $0x4] sm:$0x3]
      %v534 = vld [vmem:[#allocation2 + $0x6] sm:$0x3]
      %v535 = vld [vmem:[#allocation2 + $0x8] sm:$0x3]
      %v536 = vld [vmem:[#allocation2 + $0xa] sm:$0x3]
      %v537 = vld [vmem:[#allocation2 + $0xc] sm:$0x3]
      %v538 = vld [vmem:[#allocation2 + $0xe] sm:$0x3]
      %v540 = vlaneseq
      %v541 = vshrl.u32 %v540, 7
      %v542 = vsub.s32 0, %v541
      %v543 = vrot.slane %v531, %v542
      %v544 = vlaneseq
      %v545 = vshrl.u32 %v544, 7
      %v546 = vsub.s32 1, %v545
      %v547 = vrot.slane %v531, %v546
      %v550 = vsel %vm214, %v543, 0.0
      %v551 = vsel %vm214, %v547, 0.0
      %v552 = vadd.f32 %v550, %v551
      %553 = vadd.xlane.f32.xlu0 %v552
      %v554 = vpop.xlane.xlu0 %553
      %v555 = vrot.slane %v554, 4
      %v556 = vadd.f32 %v554, %v555
      %v557 = vrot.slane %v556, 2
      %v558 = vadd.f32 %v556, %v557
      %v559 = vrot.slane %v558, 1
      %v560 = vadd.f32 %v558, %v559
      %s561 = vtos %v560
      %s562 = scalar_lea.smem [#allocation8], 0
      %563 = sst [smem:[%s562]] %s561
      %v565 = vlaneseq
      %v566 = vshrl.u32 %v565, 7
      %v567 = vsub.s32 0, %v566
      %v568 = vrot.slane %v535, %v567
      %v569 = vlaneseq
      %v570 = vshrl.u32 %v569, 7
      %v571 = vsub.s32 1, %v570
      %v572 = vrot.slane %v535, %v571
      %v575 = vsel %vm214, %v568, 0.0
      %v576 = vsel %vm214, %v572, 0.0
      %v577 = vadd.f32 %v575, %v576
      %578 = vadd.xlane.f32.xlu0 %v577
      %v579 = vpop.xlane.xlu0 %578
      %v580 = vrot.slane %v579, 4
      %v581 = vadd.f32 %v579, %v580
      %v582 = vrot.slane %v581, 2
      %v583 = vadd.f32 %v581, %v582
      %v584 = vrot.slane %v583, 1
      %v585 = vadd.f32 %v583, %v584
      %s586 = vtos %v585
      %s587 = scalar_lea.smem [#allocation8], 1
      %588 = sst [smem:[%s587]] %s586
      %v590 = vlaneseq
      %v591 = vshrl.u32 %v590, 7
      %v592 = vsub.s32 0, %v591
      %v593 = vrot.slane %v532, %v592
      %v594 = vlaneseq
      %v595 = vshrl.u32 %v594, 7
      %v596 = vsub.s32 1, %v595
      %v597 = vrot.slane %v532, %v596
      %v600 = vsel %vm214, %v593, 0.0
      %v601 = vsel %vm214, %v597, 0.0
      %v602 = vadd.f32 %v600, %v601
      %603 = vadd.xlane.f32.xlu0 %v602
      %v604 = vpop.xlane.xlu0 %603
      %v605 = vrot.slane %v604, 4
      %v606 = vadd.f32 %v604, %v605
      %v607 = vrot.slane %v606, 2
      %v608 = vadd.f32 %v606, %v607
      %v609 = vrot.slane %v608, 1
      %v610 = vadd.f32 %v608, %v609
      %s611 = vtos %v610
      %s612 = scalar_lea.smem [#allocation8], 2
      %613 = sst [smem:[%s612]] %s611
      %v615 = vlaneseq
      %v616 = vshrl.u32 %v615, 7
      %v617 = vsub.s32 0, %v616
      %v618 = vrot.slane %v536, %v617
      %v619 = vlaneseq
      %v620 = vshrl.u32 %v619, 7
      %v621 = vsub.s32 1, %v620
      %v622 = vrot.slane %v536, %v621
      %v625 = vsel %vm214, %v618, 0.0
      %v626 = vsel %vm214, %v622, 0.0
      %v627 = vadd.f32 %v625, %v626
      %628 = vadd.xlane.f32.xlu0 %v627
      %v629 = vpop.xlane.xlu0 %628
      %v630 = vrot.slane %v629, 4
      %v631 = vadd.f32 %v629, %v630
      %v632 = vrot.slane %v631, 2
      %v633 = vadd.f32 %v631, %v632
      %v634 = vrot.slane %v633, 1
      %v635 = vadd.f32 %v633, %v634
      %s636 = vtos %v635
      %s637 = scalar_lea.smem [#allocation8], 3
      %638 = sst [smem:[%s637]] %s636
      %v640 = vlaneseq
      %v641 = vshrl.u32 %v640, 7
      %v642 = vsub.s32 0, %v641
      %v643 = vrot.slane %v533, %v642
      %v644 = vlaneseq
      %v645 = vshrl.u32 %v644, 7
      %v646 = vsub.s32 1, %v645
      %v647 = vrot.slane %v533, %v646
      %v650 = vsel %vm214, %v643, 0.0
      %v651 = vsel %vm214, %v647, 0.0
      %v652 = vadd.f32 %v650, %v651
      %653 = vadd.xlane.f32.xlu0 %v652
      %v654 = vpop.xlane.xlu0 %653
      %v655 = vrot.slane %v654, 4
      %v656 = vadd.f32 %v654, %v655
      %v657 = vrot.slane %v656, 2
      %v658 = vadd.f32 %v656, %v657
      %v659 = vrot.slane %v658, 1
      %v660 = vadd.f32 %v658, %v659
      %s661 = vtos %v660
      %s662 = scalar_lea.smem [#allocation8], 4
      %663 = sst [smem:[%s662]] %s661
      %v665 = vlaneseq
      %v666 = vshrl.u32 %v665, 7
      %v667 = vsub.s32 0, %v666
      %v668 = vrot.slane %v537, %v667
      %v669 = vlaneseq
      %v670 = vshrl.u32 %v669, 7
      %v671 = vsub.s32 1, %v670
      %v672 = vrot.slane %v537, %v671
      %v675 = vsel %vm214, %v668, 0.0
      %v676 = vsel %vm214, %v672, 0.0
      %v677 = vadd.f32 %v675, %v676
      %678 = vadd.xlane.f32.xlu0 %v677
      %v679 = vpop.xlane.xlu0 %678
      %v680 = vrot.slane %v679, 4
      %v681 = vadd.f32 %v679, %v680
      %v682 = vrot.slane %v681, 2
      %v683 = vadd.f32 %v681, %v682
      %v684 = vrot.slane %v683, 1
      %v685 = vadd.f32 %v683, %v684
      %s686 = vtos %v685
      %s687 = scalar_lea.smem [#allocation8], 5
      %688 = sst [smem:[%s687]] %s686
      %v690 = vlaneseq
      %v691 = vshrl.u32 %v690, 7
      %v692 = vsub.s32 0, %v691
      %v693 = vrot.slane %v534, %v692
      %v694 = vlaneseq
      %v695 = vshrl.u32 %v694, 7
      %v696 = vsub.s32 1, %v695
      %v697 = vrot.slane %v534, %v696
      %v700 = vsel %vm214, %v693, 0.0
      %v701 = vsel %vm214, %v697, 0.0
      %v702 = vadd.f32 %v700, %v701
      %703 = vadd.xlane.f32.xlu0 %v702
      %v704 = vpop.xlane.xlu0 %703
      %v705 = vrot.slane %v704, 4
      %v706 = vadd.f32 %v704, %v705
      %v707 = vrot.slane %v706, 2
      %v708 = vadd.f32 %v706, %v707
      %v709 = vrot.slane %v708, 1
      %v710 = vadd.f32 %v708, %v709
      %s711 = vtos %v710
      %s712 = scalar_lea.smem [#allocation8], 6
      %713 = sst [smem:[%s712]] %s711
      %v715 = vlaneseq
      %v716 = vshrl.u32 %v715, 7
      %v717 = vsub.s32 0, %v716
      %v718 = vrot.slane %v538, %v717
      %v719 = vlaneseq
      %v720 = vshrl.u32 %v719, 7
      %v721 = vsub.s32 1, %v720
      %v722 = vrot.slane %v538, %v721
      %v725 = vsel %vm214, %v718, 0.0
      %v726 = vsel %vm214, %v722, 0.0
      %v727 = vadd.f32 %v725, %v726
      %728 = vadd.xlane.f32.xlu0 %v727
      %v729 = vpop.xlane.xlu0 %728
      %v730 = vrot.slane %v729, 4
      %v731 = vadd.f32 %v729, %v730
      %v732 = vrot.slane %v731, 2
      %v733 = vadd.f32 %v731, %v732
      %v734 = vrot.slane %v733, 1
      %v735 = vadd.f32 %v733, %v734
      %s736 = vtos %v735
      %s737 = scalar_lea.smem [#allocation8], 7
      %738 = sst [smem:[%s737]] %s736
    $region25: #{tpu_custom_call.1} parent=1 // pred_fallthru
      _
    // Predicated region
    $region26: #{tpu_custom_call.1} parent=1 // pred_check
      _
    $region27: #{tpu_custom_call.1} parent=1 // pred_check_branch
      %740 = sbr.rel (0) target = $region29
    $region28: #{tpu_custom_call.1} parent=1 // pred_region
      %s742 = ssub.s32 16, 16
      %743 = vsyncadd [#allocation5], %s742
      %746 = dma.smem_to_hbm [#allocation8], 16, %s2, [#allocation5]
    $region29: #{tpu_custom_call.1} parent=1 // pred_fallthru
      _
    // Predicated region
    $region30: #{tpu_custom_call.1} parent=1 // pred_check
      _
    $region31: #{tpu_custom_call.1} parent=1 // pred_check_branch
      %748 = sbr.rel (0) target = $region33
    $region32: #{tpu_custom_call.1} parent=1 // pred_region
      %749 = dma.done [#allocation5], 16
    $region33: #{tpu_custom_call.1} parent=1 // pred_fallthru
      _
    %750 = sfence
    %751 = vsyncpa [#allocation4], 1
    %752 = vsyncpa [#allocation7], 1
    %753 = vsyncpa [#allocation5], 1

</llo_original>
